<compile_context>
chip_gen: v7x
topology: tpu7x:2x2x1
jax: 0.10.0
libtpu: 0.0.40
codegen_flags: <defaults>
</compile_context>

<pallas_src>
import functools

import jax
import jax.numpy as jnp
from jax.experimental import pallas as pl
from jax.experimental.pallas import tpu as pltpu


def _cdiv(a: int, b: int) -> int:
    return (a + b - 1) // b


def _round_up(n: int, m: int) -> int:
    return ((n + m - 1) // m) * m


def _fused_mlp_kernel(x_ref, *refs, n_layers: int, mxu_dtype):
    """refs = (w0, b0, w1, b1, ..., w_{L-1}, b_{L-1}, o_ref).

    Chains all linear layers while the activations stay resident in VMEM:
    y = relu(y @ w_i + b_i) for hidden layers, no ReLU on the last layer.
    Only the final result is stored (lane width == true output_dim).
    """
    o_ref = refs[-1]
    y = x_ref[...].astype(jnp.float32)
    for i in range(n_layers):
        w = refs[2 * i][...]
        b = refs[2 * i + 1][...].astype(jnp.float32)
        # Cast only the MXU operands; accumulate / bias / ReLU in f32.
        y = jnp.dot(y.astype(mxu_dtype), w.astype(mxu_dtype),
                    preferred_element_type=jnp.float32) + b
        if i < n_layers - 1:
            y = jnp.maximum(y, 0.0)
    o_ref[...] = y.astype(o_ref.dtype)


def decoder_forward(x: jax.Array, params, *, batch_tile: int = 1024,
                    mxu_dtype=jnp.float32) -> jax.Array:
    """Fused Decoder forward.

    x: (B, input_dim); params: list of (w_t, b) with w_t shaped (in, out)
    (already transposed from PyTorch's (out, in)) and b shaped (1, out).
    """
    B, Din = x.shape
    n_layers = len(params)
    dims = [Din] + [w.shape[1] for (w, _) in params]
    Dout = dims[-1]

    # Grid-step count: enough steps to bound the per-tile size, and at least
    # 2 steps once the batch is non-trivial so the "parallel" axis can shard
    # across both TensorCores on v7x (no cost on single-TC v5e/v6e).
    nsteps = max(_cdiv(B, batch_tile), 2 if B >= 16 else 1)
    tm = _round_up(_cdiv(B, nsteps), 8)
    Bp = _round_up(B, tm)
    grid = Bp // tm

    # Pad only the batch dim, only when ragged (waste bounded by tile choice).
    xp = x if Bp == B else jnp.pad(x, ((0, Bp - B), (0, 0)))

    weights_biases = []
    for (w_t, b) in params:
        weights_biases.append(w_t)
        weights_biases.append(b)

    in_specs = [pl.BlockSpec((tm, Din), lambda i: (i, 0))]
    for li in range(n_layers):
        in_specs.append(
            pl.BlockSpec((dims[li], dims[li + 1]), lambda i: (0, 0)))
        in_specs.append(pl.BlockSpec((1, dims[li + 1]), lambda i: (0, 0)))

    # Explicit scoped-VMEM limit derived from the footprint (x/out double
    # buffers, replicated weights/biases, headroom for chained intermediates).
    itemsize = jnp.dtype(x.dtype).itemsize
    max_dim = max(dims)
    footprint = 2 * tm * (Din + Dout) * itemsize
    footprint += sum(2 * di * do * 4 for di, do in zip(dims[:-1], dims[1:]))
    footprint += 2 * n_layers * 8 * _round_up(max_dim, 128) * 4
    footprint += 4 * tm * _round_up(max_dim, 128) * 4
    vmem_limit = int(min(max(2 * footprint, 32 * 1024 * 1024),
                         64 * 1024 * 1024))

    kernel = functools.partial(_fused_mlp_kernel, n_layers=n_layers,
                               mxu_dtype=mxu_dtype)

    out = pl.pallas_call(
        kernel,
        out_shape=jax.ShapeDtypeStruct((Bp, Dout), x.dtype),
        grid=(grid,),
        in_specs=in_specs,
        out_specs=pl.BlockSpec((tm, Dout), lambda i: (i, 0)),
        compiler_params=pltpu.CompilerParams(
            dimension_semantics=("parallel",),
            vmem_limit_bytes=vmem_limit),
    )(xp, *weights_biases)

    return out if Bp == B else out[:B]


def init_decoder_params(key, input_dim, hidden_dims, output_dim,
                        dtype=jnp.float32):
    """Parameter init mirroring the module's layer shapes.

    Returns a list of (w_t, b) with w_t of shape (in, out) (already transposed
    from PyTorch's (out, in) convention) and b of shape (1, out).
    """
    dims = [input_dim] + list(hidden_dims) + [output_dim]
    params = []
    for ii in range(1, len(dims)):
        fan_in, fan_out = dims[ii - 1], dims[ii]
        key, kw, kb = jax.random.split(key, 3)
        bound = 1.0 / (fan_in ** 0.5)  # same scale as torch.nn.Linear default
        w_t = jax.random.uniform(kw, (fan_in, fan_out), dtype,
                                 minval=-bound, maxval=bound)
        b = jax.random.uniform(kb, (1, fan_out), dtype,
                               minval=-bound, maxval=bound)
        params.append((w_t, b))
    return params


def decoder_reference(x: jax.Array, params) -> jax.Array:
    # Pure-JAX reference for correctness checking.
    n_layers = len(params)
    for ii, (w_t, b) in enumerate(params):
        x = x @ w_t + b
        if ii < n_layers - 1:
            x = jnp.maximum(x, 0.0)
    return x


if __name__ == "__main__":
    key = jax.random.PRNGKey(0)
    key_x, key_x2, key_p = jax.random.split(key, 3)

    # Small shapes consistent with the module: latent -> hidden dims -> output.
    batch = 8
    input_dim = 8          # latent dim fed to the decoder
    hidden_dims = [32, 16]
    output_dim = 64        # reconstructed feature dim

    params = init_decoder_params(key_p, input_dim, hidden_dims, output_dim)

    # Case 1: small batch, single grid step, f32 MXU path.
    x = jax.random.normal(key_x, (batch, input_dim), dtype=jnp.float32)
    out = jax.block_until_ready(decoder_forward(x, params))
    ref = decoder_reference(x, params)
    assert out.shape == (batch, output_dim), out.shape
    assert jnp.allclose(out, ref, atol=1e-5, rtol=1e-5), (
        float(jnp.max(jnp.abs(out - ref))))

    # Case 2: ragged batch -> >=2 "parallel" grid steps + small batch padding
    # handled in the wrapper (few rows, sliced off afterwards).
    batch2 = 20
    x2 = jax.random.normal(key_x2, (batch2, input_dim), dtype=jnp.float32)
    out2 = jax.block_until_ready(decoder_forward(x2, params))
    ref2 = decoder_reference(x2, params)
    assert out2.shape == (batch2, output_dim), out2.shape
    assert jnp.allclose(out2, ref2, atol=1e-5, rtol=1e-5), (
        float(jnp.max(jnp.abs(out2 - ref2))))

    # Case 3: bf16-at-the-MXU fast path (f32 accumulate / bias / ReLU).
    out3 = jax.block_until_ready(
        decoder_forward(x2, params, mxu_dtype=jnp.bfloat16))
    assert out3.shape == (batch2, output_dim), out3.shape
    assert jnp.allclose(out3, ref2, atol=3e-2, rtol=3e-2), (
        float(jnp.max(jnp.abs(out3 - ref2))))

    print("KERNEL_OK")
</pallas_src>

<mosaic_0001>
module attributes {stable_mosaic.version = 11 : i64} {
  func.func @_fused_mlp_kernel(%arg0: i32, %arg1: memref<8x8xf32, #tpu.memory_space<vmem>>, %arg2: memref<8x32xf32, #tpu.memory_space<vmem>>, %arg3: memref<1x32xf32, #tpu.memory_space<vmem>>, %arg4: memref<32x16xf32, #tpu.memory_space<vmem>>, %arg5: memref<1x16xf32, #tpu.memory_space<vmem>>, %arg6: memref<16x64xf32, #tpu.memory_space<vmem>>, %arg7: memref<1x64xf32, #tpu.memory_space<vmem>>, %arg8: memref<8x64xf32, #tpu.memory_space<vmem>>) attributes {dimension_semantics = [#tpu.dimension_semantics<parallel>], iteration_bounds = array<i64: 1>, scalar_prefetch = 0 : i64, scratch_operands = 0 : i64, tpu.core_type = #tpu.core_type<tc>, window_params = [{transform_indices = @transform_0, window_bounds = array<i64: 8, 8>}, {pipeline_mode = #tpu.pipeline_mode<synchronous>, transform_indices = @transform_1, window_bounds = array<i64: 8, 32>}, {pipeline_mode = #tpu.pipeline_mode<synchronous>, transform_indices = @transform_2, window_bounds = array<i64: 1, 32>}, {pipeline_mode = #tpu.pipeline_mode<synchronous>, transform_indices = @transform_3, window_bounds = array<i64: 32, 16>}, {pipeline_mode = #tpu.pipeline_mode<synchronous>, transform_indices = @transform_4, window_bounds = array<i64: 1, 16>}, {pipeline_mode = #tpu.pipeline_mode<synchronous>, transform_indices = @transform_5, window_bounds = array<i64: 16, 64>}, {pipeline_mode = #tpu.pipeline_mode<synchronous>, transform_indices = @transform_6, window_bounds = array<i64: 1, 64>}, {transform_indices = @transform_7, window_bounds = array<i64: 8, 64>}]} {
    %c0 = arith.constant 0 : index
    %c0_0 = arith.constant 0 : index
    %0 = vector.load %arg1[%c0, %c0_0] : memref<8x8xf32, #tpu.memory_space<vmem>>, vector<8x8xf32>
    %c0_1 = arith.constant 0 : index
    %c0_2 = arith.constant 0 : index
    %1 = vector.load %arg2[%c0_1, %c0_2] : memref<8x32xf32, #tpu.memory_space<vmem>>, vector<8x32xf32>
    %c0_3 = arith.constant 0 : index
    %c0_4 = arith.constant 0 : index
    %2 = vector.load %arg3[%c0_3, %c0_4] : memref<1x32xf32, #tpu.memory_space<vmem>>, vector<1x32xf32>
    %cst = arith.constant dense<0.000000e+00> : vector<8x32xf32>
    %3 = tpu.matmul %0, %1, %cst {dimension_numbers = #tpu.dot_dimension_numbers<[1], [0], [0], [1], [0, 0, 1, 1], [], []>} : vector<8x8xf32>, vector<8x32xf32>, vector<8x32xf32> -> vector<8x32xf32>
    %4 = vector.broadcast %2 : vector<1x32xf32> to vector<8x32xf32>
    %5 = arith.addf %3, %4 : vector<8x32xf32>
    %cst_5 = arith.constant 0.000000e+00 : f32
    %6 = vector.broadcast %cst_5 : f32 to vector<8x32xf32>
    %7 = arith.maximumf %5, %6 : vector<8x32xf32>
    %c0_6 = arith.constant 0 : index
    %c0_7 = arith.constant 0 : index
    %8 = vector.load %arg4[%c0_6, %c0_7] : memref<32x16xf32, #tpu.memory_space<vmem>>, vector<32x16xf32>
    %c0_8 = arith.constant 0 : index
    %c0_9 = arith.constant 0 : index
    %9 = vector.load %arg5[%c0_8, %c0_9] : memref<1x16xf32, #tpu.memory_space<vmem>>, vector<1x16xf32>
    %cst_10 = arith.constant dense<0.000000e+00> : vector<8x16xf32>
    %10 = tpu.matmul %7, %8, %cst_10 {dimension_numbers = #tpu.dot_dimension_numbers<[1], [0], [0], [1], [0, 0, 1, 1], [], []>} : vector<8x32xf32>, vector<32x16xf32>, vector<8x16xf32> -> vector<8x16xf32>
    %11 = vector.broadcast %9 : vector<1x16xf32> to vector<8x16xf32>
    %12 = arith.addf %10, %11 : vector<8x16xf32>
    %cst_11 = arith.constant 0.000000e+00 : f32
    %13 = vector.broadcast %cst_11 : f32 to vector<8x16xf32>
    %14 = arith.maximumf %12, %13 : vector<8x16xf32>
    %c0_12 = arith.constant 0 : index
    %c0_13 = arith.constant 0 : index
    %15 = vector.load %arg6[%c0_12, %c0_13] : memref<16x64xf32, #tpu.memory_space<vmem>>, vector<16x64xf32>
    %c0_14 = arith.constant 0 : index
    %c0_15 = arith.constant 0 : index
    %16 = vector.load %arg7[%c0_14, %c0_15] : memref<1x64xf32, #tpu.memory_space<vmem>>, vector<1x64xf32>
    %cst_16 = arith.constant dense<0.000000e+00> : vector<8x64xf32>
    %17 = tpu.matmul %14, %15, %cst_16 {dimension_numbers = #tpu.dot_dimension_numbers<[1], [0], [0], [1], [0, 0, 1, 1], [], []>} : vector<8x16xf32>, vector<16x64xf32>, vector<8x64xf32> -> vector<8x64xf32>
    %18 = vector.broadcast %16 : vector<1x64xf32> to vector<8x64xf32>
    %19 = arith.addf %17, %18 : vector<8x64xf32>
    %c0_17 = arith.constant 0 : index
    %c0_18 = arith.constant 0 : index
    %20 = vector.load %arg8[%c0_17, %c0_18] : memref<8x64xf32, #tpu.memory_space<vmem>>, vector<8x64xf32>
    tpu.vector_store %arg8[%c0_17, %c0_18], %19 {strides = array<i32>} : memref<8x64xf32, #tpu.memory_space<vmem>>, vector<8x64xf32>,
    return
  }
  func.func @transform_0(%arg0: i32) -> (i32, i32) {
    %c0_i32 = arith.constant 0 : i32
    %c0_i32_0 = arith.constant 0 : i32
    return %arg0, %c0_i32 : i32, i32
  }
  func.func @transform_1(%arg0: i32) -> (i32, i32) {
    %c0_i32 = arith.constant 0 : i32
    %c0_i32_0 = arith.constant 0 : i32
    %c0_i32_1 = arith.constant 0 : i32
    return %c0_i32, %c0_i32_0 : i32, i32
  }
  func.func @transform_2(%arg0: i32) -> (i32, i32) {
    %c0_i32 = arith.constant 0 : i32
    %c0_i32_0 = arith.constant 0 : i32
    %c0_i32_1 = arith.constant 0 : i32
    return %c0_i32, %c0_i32_0 : i32, i32
  }
  func.func @transform_3(%arg0: i32) -> (i32, i32) {
    %c0_i32 = arith.constant 0 : i32
    %c0_i32_0 = arith.constant 0 : i32
    %c0_i32_1 = arith.constant 0 : i32
    return %c0_i32, %c0_i32_0 : i32, i32
  }
  func.func @transform_4(%arg0: i32) -> (i32, i32) {
    %c0_i32 = arith.constant 0 : i32
    %c0_i32_0 = arith.constant 0 : i32
    %c0_i32_1 = arith.constant 0 : i32
    return %c0_i32, %c0_i32_0 : i32, i32
  }
  func.func @transform_5(%arg0: i32) -> (i32, i32) {
    %c0_i32 = arith.constant 0 : i32
    %c0_i32_0 = arith.constant 0 : i32
    %c0_i32_1 = arith.constant 0 : i32
    return %c0_i32, %c0_i32_0 : i32, i32
  }
  func.func @transform_6(%arg0: i32) -> (i32, i32) {
    %c0_i32 = arith.constant 0 : i32
    %c0_i32_0 = arith.constant 0 : i32
    %c0_i32_1 = arith.constant 0 : i32
    return %c0_i32, %c0_i32_0 : i32, i32
  }
  func.func @transform_7(%arg0: i32) -> (i32, i32) {
    %c0_i32 = arith.constant 0 : i32
    %c0_i32_0 = arith.constant 0 : i32
    return %arg0, %c0_i32 : i32, i32
  }
}

</mosaic_0001>

<llo_original>
// kernel: tpu_custom_call.1
$region0: #{tpu_custom_call.1}
  #allocation0 [shape = 'u32[]', space=smem, size = 0x4, offset = 0x4, fixed_abs, tag = 'smem constant byte address 0x4 - core index']
  #allocation1 [shape = 'u32[144,128]{1,0:T(1,128)}', space=vmem, size = 0x12000, scoped, tag = 'internal scratch']
  %s0 = inlined_call_operand.vmem [shape: f32[8,8], index: 0, kind: input, shape index: {}]
  %s1 = inlined_call_operand.vmem [shape: f32[8,32], index: 1, kind: input, shape index: {}]
  %s2 = inlined_call_operand.vmem [shape: f32[1,32], index: 2, kind: input, shape index: {}]
  %s3 = inlined_call_operand.vmem [shape: f32[32,16], index: 3, kind: input, shape index: {}]
  %s4 = inlined_call_operand.vmem [shape: f32[1,16], index: 4, kind: input, shape index: {}]
  %s5 = inlined_call_operand.vmem [shape: f32[16,64], index: 5, kind: input, shape index: {}]
  %s6 = inlined_call_operand.vmem [shape: f32[1,64], index: 6, kind: input, shape index: {}]
  %s7 = inlined_call_operand.hbm [shape: f32[8,64], index: 7, kind: output, shape index: {}]
  %s8 = sld [smem:[#allocation0]]
  $region38: #{tpu_custom_call.1} parent=0
    _
  %s10 = ssub.s32 1, %s8
  %s11 = scalar_select 0, %s10, %s8
  $region1: #{tpu_custom_call.1} parent=0
    #allocation2 [shape = 'u8[4096]{0}', space=vmem, size = 0x1000, scoped, tag = 'output window, operand 0, single buffered']
    #allocation3 [shape = 's32[1]{0}', space=sflag, size = 0x4, scoped, tag = 'scoped memory for tpu_custom_call.1']
    %12 = vsyncpa [#allocation3], 0
    // Predicated region
    $region2: #{tpu_custom_call.1} parent=1 // pred_check
      _
    $region3: #{tpu_custom_call.1} parent=1 // pred_check_branch
      %14 = sbr.rel (0) target = $region5
    $region4: #{tpu_custom_call.1} parent=1 // pred_region
      _
    $region5: #{tpu_custom_call.1} parent=1 // pred_fallthru
      _
    // Predicated region
    $region6: #{tpu_custom_call.1} parent=1 // pred_check
      _
    $region7: #{tpu_custom_call.1} parent=1 // pred_check_branch
      %16 = sbr.rel (0) target = $region9
    $region8: #{tpu_custom_call.1} parent=1 // pred_region
      _
    $region9: #{tpu_custom_call.1} parent=1 // pred_fallthru
      _
    // Predicated region
    $region10: #{tpu_custom_call.1} parent=1 // pred_check
      _
    $region11: #{tpu_custom_call.1} parent=1 // pred_check_branch
      %18 = sbr.rel (0) target = $region13
    $region12: #{tpu_custom_call.1} parent=1 // pred_region
      _
    $region13: #{tpu_custom_call.1} parent=1 // pred_fallthru
      _
    // Predicated region
    $region14: #{tpu_custom_call.1} parent=1 // pred_check
      _
    $region15: #{tpu_custom_call.1} parent=1 // pred_check_branch
      %20 = sbr.rel (0) target = $region17
    $region16: #{tpu_custom_call.1} parent=1 // pred_region
      _
    $region17: #{tpu_custom_call.1} parent=1 // pred_fallthru
      _
    // Predicated region
    $region18: #{tpu_custom_call.1} parent=1 // pred_check
      _
    $region19: #{tpu_custom_call.1} parent=1 // pred_check_branch
      %22 = sbr.rel (0) target = $region21
    $region20: #{tpu_custom_call.1} parent=1 // pred_region
      _
    $region21: #{tpu_custom_call.1} parent=1 // pred_fallthru
      _
    // Predicated region
    $region22: #{tpu_custom_call.1} parent=1 // pred_check
      _
    $region23: #{tpu_custom_call.1} parent=1 // pred_check_branch
      %24 = sbr.rel (0) target = $region25
    $region24: #{tpu_custom_call.1} parent=1 // pred_region
      _
    $region25: #{tpu_custom_call.1} parent=1 // pred_fallthru
      _
    // Predicated region
    $region26: #{tpu_custom_call.1} parent=1 // pred_check
      _
    $region27: #{tpu_custom_call.1} parent=1 // pred_check_branch
      %26 = sbr.rel (0) target = $region29
    $region28: #{tpu_custom_call.1} parent=1 // pred_region
      _
    $region29: #{tpu_custom_call.1} parent=1 // pred_fallthru
      _
    %v27 = vld [vmem:[%s0] sm:$0xff]
    %v28 = vld [vmem:[%s1] sm:$0xff]
    %v29 = vld [vmem:[%s2] sm:$0x1]
    %v31 = vlaneseq
    %v32 = vshrl.u32 %v31, 7
    %v33 = vsub.s32 0, %v32
    %v34 = vrot.slane %v29, %v33
    %vm36 = vcmask 64512
    %v38 = vsel %vm36, %v27, 0
    %40 = vmatprep.subr.mxu0 0.0
    %41 = vmatpush1.msra.mxu0 %v28
    %42 = vmatprep.subr.mxu0 0.0
    %43 = vmatpush1.msra.mxu0 0.0
    %44 = vmatprep.subr.mxu0 0.0
    %45 = vmatpush1.msra.mxu0 0.0
    %46 = vmatprep.subr.mxu0 0.0
    %47 = vmatpush1.msra.mxu0 0.0
    %48 = vmatprep.subr.mxu0 0.0
    %49 = vmatpush1.msra.mxu0 0.0
    %50 = vmatprep.subr.mxu0 0.0
    %51 = vmatpush1.msra.mxu0 0.0
    %52 = vmatprep.subr.mxu0 0.0
    %53 = vmatpush1.msra.mxu0 0.0
    %54 = vmatprep.subr.mxu0 0.0
    %55 = vmatpush1.msra.mxu0 0.0
    %56 = vmatprep.subr.mxu0 0.0
    %57 = vmatpush1.msra.mxu0 0.0
    %58 = vmatprep.subr.mxu0 0.0
    %59 = vmatpush1.msra.mxu0 0.0
    %60 = vmatprep.subr.mxu0 0.0
    %61 = vmatpush1.msra.mxu0 0.0
    %62 = vmatprep.subr.mxu0 0.0
    %63 = vmatpush1.msra.mxu0 0.0
    %64 = vmatprep.subr.mxu0 0.0
    %65 = vmatpush1.msra.mxu0 0.0
    %66 = vmatprep.subr.mxu0 0.0
    %67 = vmatpush1.msra.mxu0 0.0
    %68 = vmatprep.subr.mxu0 0.0
    %69 = vmatpush1.msra.mxu0 0.0
    %70 = vmatprep.subr.mxu0 0.0
    %71 = vmatpush1.msra.mxu0 0.0
    %72 = vmatprep.subr.mxu0 0.0
    %73 = vmatpush1.msra.mxu0 0.0
    %74 = vmatprep.subr.mxu0 0.0
    %75 = vmatpush1.msra.mxu0 0.0
    %76 = vmatprep.subr.mxu0 0.0
    %77 = vmatpush1.msra.mxu0 0.0
    %78 = vmatprep.subr.mxu0 0.0
    %79 = vmatpush1.msra.mxu0 0.0
    %80 = vmatprep.subr.mxu0 0.0
    %81 = vmatpush1.msra.mxu0 0.0
    %82 = vmatprep.subr.mxu0 0.0
    %83 = vmatpush1.msra.mxu0 0.0
    %84 = vmatprep.subr.mxu0 0.0
    %85 = vmatpush1.msra.mxu0 0.0
    %86 = vmatprep.subr.mxu0 0.0
    %87 = vmatpush1.msra.mxu0 0.0
    %88 = vmatprep.subr.mxu0 0.0
    %89 = vmatpush1.msra.mxu0 0.0
    %90 = vmatprep.subr.mxu0 0.0
    %91 = vmatpush1.msra.mxu0 0.0
    %92 = vmatprep.subr.mxu0 0.0
    %93 = vmatpush1.msra.mxu0 0.0
    %94 = vmatprep.subr.mxu0 0.0
    %95 = vmatpush1.msra.mxu0 0.0
    %96 = vmatprep.subr.mxu0 0.0
    %97 = vmatpush1.msra.mxu0 0.0
    %98 = vmatprep.subr.mxu0 0.0
    %99 = vmatpush1.msra.mxu0 0.0
    %100 = vmatprep.subr.mxu0 0.0
    %101 = vmatpush1.msra.mxu0 0.0
    %102 = vmatprep.subr.mxu0 0.0
    %103 = vmatpush1.msra.mxu0 0.0
    %104 = vmatprep.mubr.f32.mxu0 0.0
    %105 = vmatmul.mubr.f32.gmra.mrb[0].mxu0 %v38
    %v106 = vpop.f32.mrb[0].mxu0
    %v107 = vadd.f32 %v34, %v106
    %v108 = vpop.f32.mrb[0].mxu0
    %109 = vdwg.mxu0
    %v110 = vmax.f32 %v107, 0.0
    %v111 = vld [vmem:[%s3] sm:$0xff]
    %v112 = vld [vmem:[%s3 + $0x8] sm:$0xff]
    %v113 = vld [vmem:[%s3 + $0x10] sm:$0xff]
    %v114 = vld [vmem:[%s3 + $0x18] sm:$0xff]
    %v115 = vld [vmem:[%s4] sm:$0x1]
    %v117 = vlaneseq
    %v118 = vshrl.u32 %v117, 7
    %v119 = vsub.s32 0, %v118
    %v120 = vrot.slane %v115, %v119
    %vm122 = vcmask 261120
    %v124 = vsel %vm122, %v110, 0
    %126 = vmatprep.subr.mxu0 0.0
    %127 = vmatpush1.msra.mxu0 %v111
    %128 = vmatprep.subr.mxu0 0.0
    %129 = vmatpush1.msra.mxu0 %v112
    %130 = vmatprep.subr.mxu0 0.0
    %131 = vmatpush1.msra.mxu0 %v113
    %132 = vmatprep.subr.mxu0 0.0
    %133 = vmatpush1.msra.mxu0 %v114
    %134 = vmatprep.subr.mxu0 0.0
    %135 = vmatpush1.msra.mxu0 0.0
    %136 = vmatprep.subr.mxu0 0.0
    %137 = vmatpush1.msra.mxu0 0.0
    %138 = vmatprep.subr.mxu0 0.0
    %139 = vmatpush1.msra.mxu0 0.0
    %140 = vmatprep.subr.mxu0 0.0
    %141 = vmatpush1.msra.mxu0 0.0
    %142 = vmatprep.subr.mxu0 0.0
    %143 = vmatpush1.msra.mxu0 0.0
    %144 = vmatprep.subr.mxu0 0.0
    %145 = vmatpush1.msra.mxu0 0.0
    %146 = vmatprep.subr.mxu0 0.0
    %147 = vmatpush1.msra.mxu0 0.0
    %148 = vmatprep.subr.mxu0 0.0
    %149 = vmatpush1.msra.mxu0 0.0
    %150 = vmatprep.subr.mxu0 0.0
    %151 = vmatpush1.msra.mxu0 0.0
    %152 = vmatprep.subr.mxu0 0.0
    %153 = vmatpush1.msra.mxu0 0.0
    %154 = vmatprep.subr.mxu0 0.0
    %155 = vmatpush1.msra.mxu0 0.0
    %156 = vmatprep.subr.mxu0 0.0
    %157 = vmatpush1.msra.mxu0 0.0
    %158 = vmatprep.subr.mxu0 0.0
    %159 = vmatpush1.msra.mxu0 0.0
    %160 = vmatprep.subr.mxu0 0.0
    %161 = vmatpush1.msra.mxu0 0.0
    %162 = vmatprep.subr.mxu0 0.0
    %163 = vmatpush1.msra.mxu0 0.0
    %164 = vmatprep.subr.mxu0 0.0
    %165 = vmatpush1.msra.mxu0 0.0
    %166 = vmatprep.subr.mxu0 0.0
    %167 = vmatpush1.msra.mxu0 0.0
    %168 = vmatprep.subr.mxu0 0.0
    %169 = vmatpush1.msra.mxu0 0.0
    %170 = vmatprep.subr.mxu0 0.0
    %171 = vmatpush1.msra.mxu0 0.0
    %172 = vmatprep.subr.mxu0 0.0
    %173 = vmatpush1.msra.mxu0 0.0
    %174 = vmatprep.subr.mxu0 0.0
    %175 = vmatpush1.msra.mxu0 0.0
    %176 = vmatprep.subr.mxu0 0.0
    %177 = vmatpush1.msra.mxu0 0.0
    %178 = vmatprep.subr.mxu0 0.0
    %179 = vmatpush1.msra.mxu0 0.0
    %180 = vmatprep.subr.mxu0 0.0
    %181 = vmatpush1.msra.mxu0 0.0
    %182 = vmatprep.subr.mxu0 0.0
    %183 = vmatpush1.msra.mxu0 0.0
    %184 = vmatprep.subr.mxu0 0.0
    %185 = vmatpush1.msra.mxu0 0.0
    %186 = vmatprep.subr.mxu0 0.0
    %187 = vmatpush1.msra.mxu0 0.0
    %188 = vmatprep.subr.mxu0 0.0
    %189 = vmatpush1.msra.mxu0 0.0
    %190 = vmatprep.mubr.f32.mxu0 0.0
    %191 = vmatmul.mubr.f32.gmra.mrb[0].mxu0 %v124
    %v192 = vpop.f32.mrb[0].mxu0
    %v193 = vadd.f32 %v120, %v192
    %v194 = vpop.f32.mrb[0].mxu0
    %195 = vdwg.mxu0
    %v196 = vmax.f32 %v193, 0.0
    %v197 = vld [vmem:[%s5] sm:$0xff]
    %v198 = vld [vmem:[%s5 + $0x8] sm:$0xff]
    %v199 = vld [vmem:[%s6] sm:$0x1]
    %v201 = vlaneseq
    %v202 = vshrl.u32 %v201, 7
    %v203 = vsub.s32 0, %v202
    %v204 = vrot.slane %v199, %v203
    %vm206 = vcmask 130048
    %v208 = vsel %vm206, %v196, 0
    %210 = vmatprep.subr.mxu0 0.0
    %211 = vmatpush1.msra.mxu0 %v197
    %212 = vmatprep.subr.mxu0 0.0
    %213 = vmatpush1.msra.mxu0 %v198
    %214 = vmatprep.subr.mxu0 0.0
    %215 = vmatpush1.msra.mxu0 0.0
    %216 = vmatprep.subr.mxu0 0.0
    %217 = vmatpush1.msra.mxu0 0.0
    %218 = vmatprep.subr.mxu0 0.0
    %219 = vmatpush1.msra.mxu0 0.0
    %220 = vmatprep.subr.mxu0 0.0
    %221 = vmatpush1.msra.mxu0 0.0
    %222 = vmatprep.subr.mxu0 0.0
    %223 = vmatpush1.msra.mxu0 0.0
    %224 = vmatprep.subr.mxu0 0.0
    %225 = vmatpush1.msra.mxu0 0.0
    %226 = vmatprep.subr.mxu0 0.0
    %227 = vmatpush1.msra.mxu0 0.0
    %228 = vmatprep.subr.mxu0 0.0
    %229 = vmatpush1.msra.mxu0 0.0
    %230 = vmatprep.subr.mxu0 0.0
    %231 = vmatpush1.msra.mxu0 0.0
    %232 = vmatprep.subr.mxu0 0.0
    %233 = vmatpush1.msra.mxu0 0.0
    %234 = vmatprep.subr.mxu0 0.0
    %235 = vmatpush1.msra.mxu0 0.0
    %236 = vmatprep.subr.mxu0 0.0
    %237 = vmatpush1.msra.mxu0 0.0
    %238 = vmatprep.subr.mxu0 0.0
    %239 = vmatpush1.msra.mxu0 0.0
    %240 = vmatprep.subr.mxu0 0.0
    %241 = vmatpush1.msra.mxu0 0.0
    %242 = vmatprep.subr.mxu0 0.0
    %243 = vmatpush1.msra.mxu0 0.0
    %244 = vmatprep.subr.mxu0 0.0
    %245 = vmatpush1.msra.mxu0 0.0
    %246 = vmatprep.subr.mxu0 0.0
    %247 = vmatpush1.msra.mxu0 0.0
    %248 = vmatprep.subr.mxu0 0.0
    %249 = vmatpush1.msra.mxu0 0.0
    %250 = vmatprep.subr.mxu0 0.0
    %251 = vmatpush1.msra.mxu0 0.0
    %252 = vmatprep.subr.mxu0 0.0
    %253 = vmatpush1.msra.mxu0 0.0
    %254 = vmatprep.subr.mxu0 0.0
    %255 = vmatpush1.msra.mxu0 0.0
    %256 = vmatprep.subr.mxu0 0.0
    %257 = vmatpush1.msra.mxu0 0.0
    %258 = vmatprep.subr.mxu0 0.0
    %259 = vmatpush1.msra.mxu0 0.0
    %260 = vmatprep.subr.mxu0 0.0
    %261 = vmatpush1.msra.mxu0 0.0
    %262 = vmatprep.subr.mxu0 0.0
    %263 = vmatpush1.msra.mxu0 0.0
    %264 = vmatprep.subr.mxu0 0.0
    %265 = vmatpush1.msra.mxu0 0.0
    %266 = vmatprep.subr.mxu0 0.0
    %267 = vmatpush1.msra.mxu0 0.0
    %268 = vmatprep.subr.mxu0 0.0
    %269 = vmatpush1.msra.mxu0 0.0
    %270 = vmatprep.subr.mxu0 0.0
    %271 = vmatpush1.msra.mxu0 0.0
    %272 = vmatprep.subr.mxu0 0.0
    %273 = vmatpush1.msra.mxu0 0.0
    %274 = vmatprep.mubr.f32.mxu0 0.0
    %275 = vmatmul.mubr.f32.gmra.mrb[0].mxu0 %v208
    %v276 = vpop.f32.mrb[0].mxu0
    %v277 = vadd.f32 %v204, %v276
    %v278 = vpop.f32.mrb[0].mxu0
    %279 = vdwg.mxu0
    %vm280 = vcmask 523264
    %281 = vst.msk [vmem:[#allocation2] sm:$0xff] %vm280, %v277
    // Predicated region
    $region30: #{tpu_custom_call.1} parent=1 // pred_check
      _
    $region31: #{tpu_custom_call.1} parent=1 // pred_check_branch
      %283 = sbr.rel (0) target = $region33
    $region32: #{tpu_custom_call.1} parent=1 // pred_region
      %s285 = ssub.s32 128, 128
      %286 = vsyncadd [#allocation3], %s285
      %s288 = sshll.u32 [#allocation2], 4
      %s289 = int_to_ptr.vmem [resolvable:$true] %s288
      %291 = dma.vmem_to_hbm [thread:$0]  %s289, 128, %s7, [#allocation3]
    $region33: #{tpu_custom_call.1} parent=1 // pred_fallthru
      _
    // Predicated region
    $region34: #{tpu_custom_call.1} parent=1 // pred_check
      _
    $region35: #{tpu_custom_call.1} parent=1 // pred_check_branch
      %293 = sbr.rel (0) target = $region37
    $region36: #{tpu_custom_call.1} parent=1 // pred_region
      %294 = dma.done [#allocation3], 128
    $region37: #{tpu_custom_call.1} parent=1 // pred_fallthru
      _
    %295 = vsyncpa [#allocation3], 1

</llo_original>
